<compile_context>
chip_gen: v6e
topology: v6e:2x2x1
jax: 0.10.0
libtpu: 0.0.40
codegen_flags: <defaults>
</compile_context>

<pallas_src>
import math

import jax
import jax.numpy as jnp
from jax.experimental import pallas as pl
from jax.experimental.pallas import tpu as pltpu


def _softplus(w):
    # Numerically stable softplus: max(w, 0) + log1p(exp(-|w|)).
    return jnp.maximum(w, 0.0) + jnp.log1p(jnp.exp(-jnp.abs(w)))


def _make_kernel(apply_softplus: bool, multi_k: bool):
    """Build the kernel with trace-time specialization flags baked in."""
    if multi_k:
        def kernel(x_ref, w_ref, b_ref, o_ref, acc_ref):
            k = pl.program_id(2)

            @pl.when(k == 0)
            def _():
                acc_ref[...] = jnp.zeros_like(acc_ref)

            w = w_ref[...]
            if apply_softplus:          # only when grid_m == 1 (no recompute)
                w = _softplus(w)
            acc_ref[...] += jnp.dot(x_ref[...], w,
                                    preferred_element_type=jnp.float32)

            @pl.when(k == pl.num_programs(2) - 1)
            def _():
                # Single lane-dense store; bias broadcast over rows.
                o_ref[...] = (acc_ref[...] + b_ref[...]).astype(o_ref.dtype)
    else:
        def kernel(x_ref, w_ref, b_ref, o_ref):
            w = w_ref[...]
            if apply_softplus:
                w = _softplus(w)
            acc = jnp.dot(x_ref[...], w, preferred_element_type=jnp.float32)
            o_ref[...] = (acc + b_ref[...]).astype(o_ref.dtype)
    return kernel


def _round_up(v: int, m: int) -> int:
    return ((v + m - 1) // m) * m


# Tile caps (f32): ~7 MiB of double-buffered VMEM — safe on v5e/v6e/v7x.
_TM_CAP = 512
_TN_CAP = 512
_TK_CAP = 512
# Below ~one 128^3 tile of MACs the pallas_call overhead beats the MXU win.
_SMALL_WORK_MACS = 128 * 128 * 128


def positive_linear(x: jax.Array, weight: jax.Array, bias=None, *,
                    force_pallas: bool = False) -> jax.Array:
    """Pallas equivalent of PositiveLinear.forward: x @ softplus(W).T + bias."""
    out_features, in_features = weight.shape
    lead_shape = x.shape[:-1]
    assert x.shape[-1] == in_features, (x.shape, weight.shape)

    M = math.prod(lead_shape) if lead_shape else 1
    K, N = in_features, out_features

    if weight.dtype != x.dtype:
        weight = weight.astype(x.dtype)
    if bias is None:
        bias = jnp.zeros((N,), x.dtype)
    elif bias.dtype != x.dtype:
        bias = bias.astype(x.dtype)

    # Small-problem fallback: the real en_cnf gamma-net layers are (1,1)/(1,H)/
    # (H,1); XLA fusion beats a kernel launch there.
    if not force_pallas and M * K * N < _SMALL_WORK_MACS:
        y = jnp.dot(x.reshape(M, K), _softplus(weight).T,
                    preferred_element_type=jnp.float32)
        y = (y + bias[None, :]).astype(x.dtype)
        return y.reshape(*lead_shape, N)

    x2d = x.reshape(M, K)

    # Tile selection: use the full dim as the block when it fits under the cap
    # (legal per the (8,128)-or-full-dim rule → no padding); otherwise tile at
    # the cap and zero-pad only that axis.
    if M <= _TM_CAP:
        tm, Mp = M, M
    else:
        tm, Mp = _TM_CAP, _round_up(M, _TM_CAP)
    if K <= _TK_CAP:
        tk, Kp = K, K
    else:
        tk, Kp = _TK_CAP, _round_up(K, _TK_CAP)
    if N <= _TN_CAP:
        tn, Np = N, N
    else:
        tn, Np = _TN_CAP, _round_up(N, _TN_CAP)

    grid_m, grid_n, grid_k = Mp // tm, Np // tn, Kp // tk
    multi_k = grid_k > 1
    # Hoist softplus(W) into one fused wrapper pass when the weight would be
    # revisited once per M-tile; keep it in-kernel for the single-M-tile case.
    hoist_softplus = grid_m > 1

    wT = _softplus(weight).T if hoist_softplus else weight.T  # (K, N), lane-dense N

    # Zero-padding K on x neutralizes any softplus(0)=log2 rows in padded W;
    # padded M/N regions are sliced off below.
    if Mp != M or Kp != K:
        x2d = jnp.pad(x2d, ((0, Mp - M), (0, Kp - K)))
    if Kp != K or Np != N:
        wT = jnp.pad(wT, ((0, Kp - K), (0, Np - N)))
    b_row = bias if Np == N else jnp.pad(bias, (0, Np - N))
    b_row = b_row.reshape(1, Np)

    itemsize = jnp.dtype(x.dtype).itemsize
    cost = pl.CostEstimate(
        flops=2 * M * N * K,
        transcendentals=(0 if hoist_softplus else 2 * K * N),
        bytes_accessed=(Mp * Kp + Kp * Np + Mp * Np + Np) * itemsize,
    )

    kernel = _make_kernel(apply_softplus=not hoist_softplus, multi_k=multi_k)

    if multi_k:
        grid = (grid_m, grid_n, grid_k)
        in_specs = [
            pl.BlockSpec((tm, tk), lambda i, j, k: (i, k)),   # x tile
            pl.BlockSpec((tk, tn), lambda i, j, k: (k, j)),   # W^T tile
            pl.BlockSpec((1, tn), lambda i, j, k: (0, j)),    # bias row
        ]
        out_specs = pl.BlockSpec((tm, tn), lambda i, j, k: (i, j))
        scratch_shapes = [pltpu.VMEM((tm, tn), jnp.float32)]
        dim_sem = ("parallel", "parallel", "arbitrary")
    else:
        grid = (grid_m, grid_n)
        in_specs = [
            pl.BlockSpec((tm, tk), lambda i, j: (i, 0)),
            pl.BlockSpec((tk, tn), lambda i, j: (0, j)),
            pl.BlockSpec((1, tn), lambda i, j: (0, j)),
        ]
        out_specs = pl.BlockSpec((tm, tn), lambda i, j: (i, j))
        scratch_shapes = []
        dim_sem = ("parallel", "parallel")

    out = pl.pallas_call(
        kernel,
        out_shape=jax.ShapeDtypeStruct((Mp, Np), x.dtype),
        grid_spec=pltpu.PrefetchScalarGridSpec(
            num_scalar_prefetch=0,
            grid=grid,
            in_specs=in_specs,
            out_specs=out_specs,
            scratch_shapes=scratch_shapes,
        ),
        compiler_params=pltpu.CompilerParams(dimension_semantics=dim_sem),
        cost_estimate=cost,
    )(x2d, wT, b_row)

    if Mp != M or Np != N:
        out = out[:M, :N]
    return out.reshape(*lead_shape, N)


def _reference(x: jax.Array, weight: jax.Array, bias) -> jax.Array:
    pos_w = jax.nn.softplus(weight.astype(jnp.float32))
    y = jnp.einsum("...k,nk->...n", x.astype(jnp.float32), pos_w)
    if bias is not None:
        y = y + bias.astype(jnp.float32)
    return y.astype(x.dtype)


if __name__ == "__main__":
    key = jax.random.PRNGKey(0)
    k_x, k_w, k_b, k_x2, k_w2, k_b2 = jax.random.split(key, 6)

    # --- Test 1: small shapes (single-tile, in-kernel softplus path) ---------
    in_features, out_features = 32, 32
    batch = (2, 8)  # F.linear accepts arbitrary leading dims
    x = jax.random.normal(k_x, (*batch, in_features), dtype=jnp.float32)
    # Mimic PositiveLinear init: kaiming_uniform(a=sqrt(5)) then offset -2.
    bound_w = 1.0 / math.sqrt(in_features)
    weight = (jax.random.uniform(k_w, (out_features, in_features), jnp.float32,
                                 -bound_w, bound_w) - 2.0)
    bias = jax.random.uniform(k_b, (out_features,), jnp.float32, -bound_w, bound_w)

    out = jax.block_until_ready(positive_linear(x, weight, bias, force_pallas=True))
    ref = _reference(x, weight, bias)
    assert out.shape == ref.shape, (out.shape, ref.shape)
    assert jnp.allclose(out, ref, atol=1e-5, rtol=1e-5), \
        float(jnp.max(jnp.abs(out - ref)))

    # Also exercise the tiny-problem jnp fallback path (auto-selected).
    out_fb = jax.block_until_ready(positive_linear(x, weight, bias))
    assert jnp.allclose(out_fb, ref, atol=1e-5, rtol=1e-5)

    # --- Test 2: tiled path (M/K tiling, hoisted softplus, K accumulator) ---
    in2, out2 = 640, 160
    batch2 = (4, 160)  # M = 640 > TM_CAP → 2 M-tiles; K = 640 → 2 K-tiles
    x2 = jax.random.normal(k_x2, (*batch2, in2), dtype=jnp.float32)
    bw2 = 1.0 / math.sqrt(in2)
    weight2 = (jax.random.uniform(k_w2, (out2, in2), jnp.float32, -bw2, bw2) - 2.0)
    bias2 = jax.random.uniform(k_b2, (out2,), jnp.float32, -bw2, bw2)

    out2_v = jax.block_until_ready(positive_linear(x2, weight2, bias2))
    ref2 = _reference(x2, weight2, bias2)
    assert out2_v.shape == ref2.shape, (out2_v.shape, ref2.shape)
    assert jnp.allclose(out2_v, ref2, atol=2e-3, rtol=1e-3), \
        float(jnp.max(jnp.abs(out2_v - ref2)))

    print("KERNEL_OK")
</pallas_src>

<mosaic_0001>
module attributes {stable_mosaic.version = 11 : i64} {
  func.func @kernel(%arg0: i32, %arg1: i32, %arg2: memref<16x32xf32, #tpu.memory_space<vmem>>, %arg3: memref<32x32xf32, #tpu.memory_space<vmem>>, %arg4: memref<1x32xf32, #tpu.memory_space<vmem>>, %arg5: memref<16x32xf32, #tpu.memory_space<vmem>>) attributes {dimension_semantics = [#tpu.dimension_semantics<parallel>, #tpu.dimension_semantics<parallel>], iteration_bounds = array<i64: 1, 1>, scalar_prefetch = 0 : i64, scratch_operands = 0 : i64, tpu.core_type = #tpu.core_type<tc>, window_params = [{transform_indices = @transform_0, window_bounds = array<i64: 16, 32>}, {transform_indices = @transform_1, window_bounds = array<i64: 32, 32>}, {transform_indices = @transform_2, window_bounds = array<i64: 1, 32>}, {transform_indices = @transform_3, window_bounds = array<i64: 16, 32>}]} {
    %c0 = arith.constant 0 : index
    %c0_0 = arith.constant 0 : index
    %0 = vector.load %arg3[%c0, %c0_0] : memref<32x32xf32, #tpu.memory_space<vmem>>, vector<32x32xf32>
    %cst = arith.constant 0.000000e+00 : f32
    %1 = vector.broadcast %cst : f32 to vector<32x32xf32>
    %2 = arith.maximumf %0, %1 : vector<32x32xf32>
    %3 = math.absf %0 : vector<32x32xf32>
    %cst_1 = arith.constant 0.000000e+00 : f32
    %4 = vector.broadcast %cst_1 : f32 to vector<32x32xf32>
    %5 = arith.subf %4, %3 : vector<32x32xf32>
    %6 = math.exp %5 : vector<32x32xf32>
    %7 = math.log1p %6 : vector<32x32xf32>
    %8 = arith.addf %2, %7 : vector<32x32xf32>
    %c0_2 = arith.constant 0 : index
    %c0_3 = arith.constant 0 : index
    %9 = vector.load %arg2[%c0_2, %c0_3] : memref<16x32xf32, #tpu.memory_space<vmem>>, vector<16x32xf32>
    %cst_4 = arith.constant dense<0.000000e+00> : vector<16x32xf32>
    %10 = tpu.matmul %9, %8, %cst_4 {dimension_numbers = #tpu.dot_dimension_numbers<[1], [0], [0], [1], [0, 0, 1, 1], [], []>} : vector<16x32xf32>, vector<32x32xf32>, vector<16x32xf32> -> vector<16x32xf32>
    %c0_5 = arith.constant 0 : index
    %c0_6 = arith.constant 0 : index
    %11 = vector.load %arg4[%c0_5, %c0_6] : memref<1x32xf32, #tpu.memory_space<vmem>>, vector<1x32xf32>
    %12 = vector.broadcast %11 : vector<1x32xf32> to vector<16x32xf32>
    %13 = arith.addf %10, %12 : vector<16x32xf32>
    %c0_7 = arith.constant 0 : index
    %c0_8 = arith.constant 0 : index
    %14 = vector.load %arg5[%c0_7, %c0_8] : memref<16x32xf32, #tpu.memory_space<vmem>>, vector<16x32xf32>
    tpu.vector_store %arg5[%c0_7, %c0_8], %13 {strides = array<i32>} : memref<16x32xf32, #tpu.memory_space<vmem>>, vector<16x32xf32>,
    return
  }
  func.func @transform_0(%arg0: i32, %arg1: i32) -> (i32, i32) {
    %c0_i32 = arith.constant 0 : i32
    %c0_i32_0 = arith.constant 0 : i32
    return %arg0, %c0_i32 : i32, i32
  }
  func.func @transform_1(%arg0: i32, %arg1: i32) -> (i32, i32) {
    %c0_i32 = arith.constant 0 : i32
    %c0_i32_0 = arith.constant 0 : i32
    return %c0_i32, %arg1 : i32, i32
  }
  func.func @transform_2(%arg0: i32, %arg1: i32) -> (i32, i32) {
    %c0_i32 = arith.constant 0 : i32
    %c0_i32_0 = arith.constant 0 : i32
    return %c0_i32, %arg1 : i32, i32
  }
  func.func @transform_3(%arg0: i32, %arg1: i32) -> (i32, i32) {
    %c0_i32 = arith.constant 0 : i32
    return %arg0, %arg1 : i32, i32
  }
}

</mosaic_0001>

<llo_original>
// kernel: tpu_custom_call.1
$region0: #{tpu_custom_call.1}
  #allocation0 [shape = 'u32[]', space=smem, size = 0x4, offset = 0x4, fixed_abs, tag = 'smem constant byte address 0x4 - core index']
  #allocation1 [shape = 'u32[144,128]{1,0:T(1,128)}', space=vmem, size = 0x12000, scoped, tag = 'internal scratch']
  %s0 = inlined_call_operand.hbm [shape: f32[16,32], index: 0, kind: input, shape index: {}]
  %s1 = inlined_call_operand.hbm [shape: f32[32,32], index: 1, kind: input, shape index: {}]
  %s2 = inlined_call_operand.vmem [shape: f32[1,32], index: 2, kind: input, shape index: {}]
  %s3 = inlined_call_operand.hbm [shape: f32[16,32], index: 3, kind: output, shape index: {}]
  %s4 = sld [smem:[#allocation0]]
  $region30: #{tpu_custom_call.1} parent=0
    _
  %s6 = ssub.s32 1, %s4
  %s7 = scalar_select 0, %s6, %s4
  $region1: #{tpu_custom_call.1} parent=0
    #allocation2 [shape = 'u8[8192]{0}', space=vmem, size = 0x2000, scoped, tag = 'input window, operand 0, single buffered']
    #allocation3 [shape = 's32[1]{0}', space=sflag, size = 0x4, scoped, tag = 'scoped memory for tpu_custom_call.1']
    #allocation4 [shape = 's32[1]{0}', space=sflag, size = 0x4, scoped, tag = 'scoped memory for tpu_custom_call.1']
    #allocation5 [shape = 'u8[16384]{0}', space=vmem, size = 0x4000, scoped, tag = 'input window, operand 1, single buffered']
    #allocation6 [shape = 's32[1]{0}', space=sflag, size = 0x4, scoped, tag = 'scoped memory for tpu_custom_call.1']
    #allocation7 [shape = 'u8[8192]{0}', space=vmem, size = 0x2000, scoped, tag = 'output window, operand 0, single buffered']
    %8 = vsyncpa [#allocation3], 0
    %9 = vsyncpa [#allocation6], 0
    %10 = vsyncpa [#allocation4], 0
    // Predicated region
    $region2: #{tpu_custom_call.1} parent=1 // pred_check
      _
    $region3: #{tpu_custom_call.1} parent=1 // pred_check_branch
      %12 = sbr.rel (0) target = $region5
    $region4: #{tpu_custom_call.1} parent=1 // pred_region
      %s14 = ssub.s32 256, 256
      %15 = vsyncadd [#allocation3], %s14
      %s16 = sshll.u32 [#allocation2], 4
      %s17 = int_to_ptr.vmem [resolvable:$true] %s16
      %22 = dma.hbm_to_vmem [thread:$0]  %s0, 256, %s17, [#allocation3], 128, 128, 8
    $region5: #{tpu_custom_call.1} parent=1 // pred_fallthru
      _
    // Predicated region
    $region6: #{tpu_custom_call.1} parent=1 // pred_check
      _
    $region7: #{tpu_custom_call.1} parent=1 // pred_check_branch
      %24 = sbr.rel (0) target = $region9
    $region8: #{tpu_custom_call.1} parent=1 // pred_region
      %s26 = ssub.s32 512, 512
      %27 = vsyncadd [#allocation6], %s26
      %s28 = sshll.u32 [#allocation5], 4
      %s29 = int_to_ptr.vmem [resolvable:$true] %s28
      %34 = dma.hbm_to_vmem [thread:$0]  %s1, 512, %s29, [#allocation6], 128, 128, 8
    $region9: #{tpu_custom_call.1} parent=1 // pred_fallthru
      _
    // Predicated region
    $region10: #{tpu_custom_call.1} parent=1 // pred_check
      _
    $region11: #{tpu_custom_call.1} parent=1 // pred_check_branch
      %36 = sbr.rel (0) target = $region13
    $region12: #{tpu_custom_call.1} parent=1 // pred_region
      _
    $region13: #{tpu_custom_call.1} parent=1 // pred_fallthru
      _
    // Predicated region
    $region14: #{tpu_custom_call.1} parent=1 // pred_check
      _
    $region15: #{tpu_custom_call.1} parent=1 // pred_check_branch
      %38 = sbr.rel (0) target = $region17
    $region16: #{tpu_custom_call.1} parent=1 // pred_region
      %39 = dma.done [#allocation3], 256
    $region17: #{tpu_custom_call.1} parent=1 // pred_fallthru
      _
    // Predicated region
    $region18: #{tpu_custom_call.1} parent=1 // pred_check
      _
    $region19: #{tpu_custom_call.1} parent=1 // pred_check_branch
      %41 = sbr.rel (0) target = $region21
    $region20: #{tpu_custom_call.1} parent=1 // pred_region
      %42 = dma.done [#allocation6], 512
    $region21: #{tpu_custom_call.1} parent=1 // pred_fallthru
      _
    %v43 = vld [vmem:[#allocation5] sm:$0xff]
    %v44 = vld [vmem:[#allocation5 + $0x8] sm:$0xff]
    %v45 = vld [vmem:[#allocation5 + $0x10] sm:$0xff]
    %v46 = vld [vmem:[#allocation5 + $0x18] sm:$0xff]
    %v47 = vmax.f32 %v43, 0.0
    %v48 = vmax.f32 %v44, 0.0
    %v49 = vmax.f32 %v45, 0.0
    %v50 = vmax.f32 %v46, 0.0
    %v51 = vand.u32 2147483647, %v43
    %v52 = vand.u32 2147483647, %v44
    %v53 = vand.u32 2147483647, %v45
    %v54 = vand.u32 2147483647, %v46
    %v55 = vsub.f32 0.0, %v51
    %v56 = vsub.f32 0.0, %v52
    %v57 = vsub.f32 0.0, %v53
    %v58 = vsub.f32 0.0, %v54
    %v59 = vmul.f32 %v55, 1.442695
    %v60 = vpow.pop %v59
    %v61 = vmul.f32 %v56, 1.442695
    %v62 = vpow.pop %v61
    %v63 = vmul.f32 %v57, 1.442695
    %v64 = vpow.pop %v63
    %v65 = vmul.f32 %v58, 1.442695
    %v66 = vpow.pop %v65
    %v67 = vadd.f32 %v60, 1.0
    %v68 = vlog2.pop %v67
    %v69 = vmul.f32 %v68, 0.6931472
    %v70 = vmul.f32 -0.5, %v60
    %v71 = vadd.f32 %v70, 1.0
    %v72 = vmul.f32 %v71, %v60
    %v73 = vand.u32 2147483647, %v60
    %vm74 = vcmp.lt.f32.partialorder %v73, 0.0004427343
    %v75 = vsel %vm74, %v72, %v69
    %v76 = vadd.f32 %v62, 1.0
    %v77 = vlog2.pop %v76
    %v78 = vmul.f32 %v77, 0.6931472
    %v79 = vmul.f32 -0.5, %v62
    %v80 = vadd.f32 %v79, 1.0
    %v81 = vmul.f32 %v80, %v62
    %v82 = vand.u32 2147483647, %v62
    %vm83 = vcmp.lt.f32.partialorder %v82, 0.0004427343
    %v84 = vsel %vm83, %v81, %v78
    %v85 = vadd.f32 %v64, 1.0
    %v86 = vlog2.pop %v85
    %v87 = vmul.f32 %v86, 0.6931472
    %v88 = vmul.f32 -0.5, %v64
    %v89 = vadd.f32 %v88, 1.0
    %v90 = vmul.f32 %v89, %v64
    %v91 = vand.u32 2147483647, %v64
    %vm92 = vcmp.lt.f32.partialorder %v91, 0.0004427343
    %v93 = vsel %vm92, %v90, %v87
    %v94 = vadd.f32 %v66, 1.0
    %v95 = vlog2.pop %v94
    %v96 = vmul.f32 %v95, 0.6931472
    %v97 = vmul.f32 -0.5, %v66
    %v98 = vadd.f32 %v97, 1.0
    %v99 = vmul.f32 %v98, %v66
    %v100 = vand.u32 2147483647, %v66
    %vm101 = vcmp.lt.f32.partialorder %v100, 0.0004427343
    %v102 = vsel %vm101, %v99, %v96
    %v103 = vadd.f32 %v47, %v75
    %v104 = vadd.f32 %v48, %v84
    %v105 = vadd.f32 %v49, %v93
    %v106 = vadd.f32 %v50, %v102
    %v107 = vld [vmem:[#allocation2] sm:$0xff]
    %v108 = vld [vmem:[#allocation2 + $0x8] sm:$0xff]
    %v109 = vld [vmem:[%s2] sm:$0x1]
    %v111 = vlaneseq
    %v112 = vshrl.u32 %v111, 7
    %v113 = vsub.s32 0, %v112
    %v114 = vrot.slane %v109, %v113
    %vm116 = vcmask 261120
    %v118 = vsel %vm116, %v107, 0
    %v121 = vsel %vm116, %v108, 0
    %123 = vmatprep.subr.mxu0 0.0
    %124 = vmatpush1.msra.mxu0 0.0
    %125 = vmatprep.subr.mxu0 0.0
    %126 = vmatpush1.msra.mxu0 0.0
    %127 = vmatprep.subr.mxu0 0.0
    %128 = vmatpush1.msra.mxu0 0.0
    %129 = vmatprep.subr.mxu0 0.0
    %130 = vmatpush1.msra.mxu0 0.0
    %131 = vmatprep.subr.mxu0 0.0
    %132 = vmatpush1.msra.mxu0 0.0
    %133 = vmatprep.subr.mxu0 0.0
    %134 = vmatpush1.msra.mxu0 0.0
    %135 = vmatprep.subr.mxu0 0.0
    %136 = vmatpush1.msra.mxu0 0.0
    %137 = vmatprep.subr.mxu0 0.0
    %138 = vmatpush1.msra.mxu0 0.0
    %139 = vmatprep.subr.mxu0 0.0
    %140 = vmatpush1.msra.mxu0 0.0
    %141 = vmatprep.subr.mxu0 0.0
    %142 = vmatpush1.msra.mxu0 0.0
    %143 = vmatprep.subr.mxu0 0.0
    %144 = vmatpush1.msra.mxu0 0.0
    %145 = vmatprep.subr.mxu0 0.0
    %146 = vmatpush1.msra.mxu0 0.0
    %147 = vmatprep.subr.mxu0 0.0
    %148 = vmatpush1.msra.mxu0 %v106
    %149 = vmatprep.subr.mxu0 0.0
    %150 = vmatpush1.msra.mxu0 %v105
    %151 = vmatprep.subr.mxu0 0.0
    %152 = vmatpush1.msra.mxu0 %v104
    %153 = vmatprep.subr.mxu0 0.0
    %154 = vmatpush1.msra.mxu0 %v103
    %155 = vmatprep.subr.mxu0 0.0
    %156 = vmatpush2.msra.mxu0 0.0
    %157 = vmatprep.subr.mxu0 0.0
    %158 = vmatpush2.msra.mxu0 0.0
    %159 = vmatprep.subr.mxu0 0.0
    %160 = vmatpush2.msra.mxu0 0.0
    %161 = vmatprep.subr.mxu0 0.0
    %162 = vmatpush2.msra.mxu0 0.0
    %163 = vmatprep.subr.mxu0 0.0
    %164 = vmatpush2.msra.mxu0 0.0
    %165 = vmatprep.subr.mxu0 0.0
    %166 = vmatpush2.msra.mxu0 0.0
    %167 = vmatprep.subr.mxu0 0.0
    %168 = vmatpush2.msra.mxu0 0.0
    %169 = vmatprep.subr.mxu0 0.0
    %170 = vmatpush2.msra.mxu0 0.0
    %171 = vmatprep.subr.mxu0 0.0
    %172 = vmatpush2.msra.mxu0 0.0
    %173 = vmatprep.subr.mxu0 0.0
    %174 = vmatpush2.msra.mxu0 0.0
    %175 = vmatprep.subr.mxu0 0.0
    %176 = vmatpush2.msra.mxu0 0.0
    %177 = vmatprep.subr.mxu0 0.0
    %178 = vmatpush2.msra.mxu0 0.0
    %179 = vmatprep.subr.mxu0 0.0
    %180 = vmatpush2.msra.mxu0 0.0
    %181 = vmatprep.subr.mxu0 0.0
    %182 = vmatpush2.msra.mxu0 0.0
    %183 = vmatprep.subr.mxu0 0.0
    %184 = vmatpush2.msra.mxu0 0.0
    %185 = vmatprep.subr.mxu0 0.0
    %186 = vmatpush2.msra.mxu0 0.0
    %187 = vmatprep.mubr.f32.mxu0 0.0
    %188 = vmatmul.mubr.f32.gmra.mxu0 %v118
    %v189 = vpop.f32.mrf.mxu0
    %v190 = vadd.f32 %v114, %v189
    %v191 = vpop.f32.mrf.mxu0
    %192 = vmatprep.mubr.f32.mxu0 0.0
    %193 = vmatmul.mubr.f32.gmra.mxu0 %v121
    %v194 = vpop.f32.mrf.mxu0
    %v195 = vadd.f32 %v114, %v194
    %v196 = vpop.f32.mrf.mxu0
    %197 = vdwg.mxu0
    %198 = vst.msk [vmem:[#allocation7] sm:$0xff] %vm116, %v190
    %199 = vst.msk [vmem:[#allocation7 + $0x8] sm:$0xff] %vm116, %v195
    // Predicated region
    $region22: #{tpu_custom_call.1} parent=1 // pred_check
      _
    $region23: #{tpu_custom_call.1} parent=1 // pred_check_branch
      %201 = sbr.rel (0) target = $region25
    $region24: #{tpu_custom_call.1} parent=1 // pred_region
      %s203 = ssub.s32 256, 256
      %204 = vsyncadd [#allocation4], %s203
      %s205 = sshll.u32 [#allocation7], 4
      %s206 = int_to_ptr.vmem [resolvable:$true] %s205
      %211 = dma.vmem_to_hbm [thread:$0]  %s206, 256, %s3, [#allocation4], 128, 128, 8
    $region25: #{tpu_custom_call.1} parent=1 // pred_fallthru
      _
    // Predicated region
    $region26: #{tpu_custom_call.1} parent=1 // pred_check
      _
    $region27: #{tpu_custom_call.1} parent=1 // pred_check_branch
      %213 = sbr.rel (0) target = $region29
    $region28: #{tpu_custom_call.1} parent=1 // pred_region
      %214 = dma.done [#allocation4], 256
    $region29: #{tpu_custom_call.1} parent=1 // pred_fallthru
      _
    %215 = vsyncpa [#allocation3], 1
    %216 = vsyncpa [#allocation6], 1
    %217 = vsyncpa [#allocation4], 1

</llo_original>
